<compile_context>
chip_gen: v7x
topology: tpu7x:2x2x1
jax: 0.10.0
libtpu: 0.0.40
codegen_flags: <defaults>
</compile_context>

<pallas_src>
import jax
import jax.numpy as jnp
from jax.experimental import pallas as pl
from jax.experimental.pallas import tpu as pltpu


def _shuffle_kernel(x_ref, o_ref):
    # x_ref: (1, g, ct, hw_t)  block of x  viewed as (N, g, C//g, H*W)
    # o_ref: (1, ct, g, hw_t)  block of out viewed as (N, C//g, g, H*W)
    # The channel permutation across groups is realized with g static,
    # lane-dense strided stores into the output block.
    g = x_ref.shape[1]
    for a in range(g):
        o_ref[0, :, a, :] = x_ref[0, a, :, :]


def _budget(target_block_bytes):
    """Generation-aware per-block byte budget and scoped-VMEM limit."""
    vmem_cap = None
    try:
        vmem_cap = getattr(pltpu.get_tpu_info(), "vmem_capacity_bytes", None)
    except Exception:
        vmem_cap = None
    if vmem_cap is not None and vmem_cap >= 96 * 1024 * 1024:
        # v5e / v6e class parts (128 MiB VMEM): bigger blocks + raised limit.
        default_tb, vmem_limit = 4 * 1024 * 1024, 64 * 1024 * 1024
    else:
        # v7x (64 MiB per TC) or unknown: stay conservative.
        default_tb, vmem_limit = 2 * 1024 * 1024, 32 * 1024 * 1024
    tb = default_tb if target_block_bytes is None else int(target_block_bytes)
    return tb, vmem_limit


def _pick_tiles(cg, g, hw, itemsize, granule, target_bytes, batch):
    """Choose (channel_tile, hw_tile) for blocks (1, g, ct, hw_t)/(1, ct, g, hw_t).

    Constraints (Mosaic (8,128) tiling, dtype-aware sublane packing):
      * ct   must be a multiple of `granule` or equal to cg.
      * hw_t must be a multiple of 128 or equal to hw.
    Budget (best effort): g * ct * hw_t * itemsize <= target_bytes.
    """
    min_ct = cg if cg <= granule else granule

    # Only tile the lane (hw) axis if even the minimal channel tile overshoots.
    hw_t = hw
    if min_ct * g * hw * itemsize > target_bytes and hw > 128:
        hw_t = (target_bytes // (min_ct * g * itemsize)) // 128 * 128
        hw_t = max(128, min(hw_t, (hw // 128) * 128))

    row_bytes = g * hw_t * itemsize
    if cg <= granule or cg * row_bytes <= target_bytes:
        ct = cg
    else:
        ct = min(cg, max(granule, (target_bytes // row_bytes) // granule * granule))
        # Prefer an exact divisor of cg (unmasked boundary blocks) when one is
        # within 2x of the budget-optimal tile; otherwise keep the budget tile
        # and let Pallas mask the ragged last channel block (grid uses cdiv).
        divs = [d for d in range(granule, cg, granule) if cg % d == 0 and d <= ct]
        if divs and 2 * max(divs) >= ct:
            ct = max(divs)

    # Megacore: a single-tile grid leaves one v7x TensorCore idle.  Split the
    # channels with a clean divisor when possible.
    if batch * pl.cdiv(cg, ct) * pl.cdiv(hw, hw_t) < 2 and ct == cg:
        divs = [d for d in range(granule, cg, granule) if cg % d == 0]
        if divs:
            ct = max(divs)

    return ct, hw_t


def shuffle(x, groups, *, target_block_bytes=None):
    """Channel shuffle on NCHW input (any H*W, any supported dtype)."""
    N, C, H, W = x.shape
    g = int(groups)
    assert C % g == 0, "C must be divisible by groups"
    cg = C // g
    hw = H * W

    if g == 1 or N == 0 or C == 0 or hw == 0:
        return x  # identity permutation / empty

    itemsize = jnp.dtype(x.dtype).itemsize
    granule = max(8, 32 // itemsize)  # sublane granule: 8 f32, 16 bf16, 32 int8
    target_bytes, vmem_limit = _budget(target_block_bytes)
    ct, hw_t = _pick_tiles(cg, g, hw, itemsize, granule, target_bytes, N)

    n_ct = pl.cdiv(cg, ct)
    n_hw = pl.cdiv(hw, hw_t)

    x4 = x.reshape(N, g, cg, hw)  # free row-major view
    out4 = pl.pallas_call(
        _shuffle_kernel,
        out_shape=jax.ShapeDtypeStruct((N, cg, g, hw), x.dtype),
        grid=(N, n_ct, n_hw),
        in_specs=[pl.BlockSpec((1, g, ct, hw_t), lambda n, c, h: (n, 0, c, h))],
        out_specs=pl.BlockSpec((1, ct, g, hw_t), lambda n, c, h: (n, c, 0, h)),
        compiler_params=pltpu.CompilerParams(
            dimension_semantics=("parallel", "parallel", "parallel"),
            vmem_limit_bytes=vmem_limit,
        ),
        cost_estimate=pl.CostEstimate(
            flops=0, transcendentals=0,
            bytes_accessed=2 * N * C * hw * itemsize),
    )(x4)
    # out4[n, b, a, p] == x[n, a*cg + b, p]  ->  row-major reshape is free.
    return out4.reshape(N, C, H, W)


def shuffle_ref(x, groups):
    """Pure-JAX reference mirroring the PyTorch forward."""
    N, C, H, W = x.shape
    return (
        x.reshape(N, groups, C // groups, H, W)
        .transpose(0, 2, 1, 3, 4)
        .reshape(N, C, H, W)
    )


if __name__ == "__main__":
    key = jax.random.PRNGKey(0)

    def check(shape, groups, dtype=jnp.float32, **kw):
        x = jax.random.normal(key, shape).astype(dtype)
        out = jax.block_until_ready(shuffle(x, groups, **kw))
        ref = shuffle_ref(x, groups)
        assert out.shape == x.shape and out.dtype == x.dtype
        assert jnp.array_equal(out, ref), f"mismatch: {shape}, g={groups}, {dtype}"

    # Canonical small shape (batch=2, channels=4, spatial=16).
    check((2, 4, 16, 16), 2)
    # Real ShuffleNet-style spatial size: HW = 196 is NOT a multiple of 128.
    check((2, 8, 14, 14), 2)
    # More channels / groups=3 (lane-aligned HW).
    check((2, 48, 16, 16), 3)
    # Sub-32-bit dtype (sublane granule = 16 for bf16).
    check((2, 32, 8, 8), 4, dtype=jnp.bfloat16)
    # Tiny block budget -> exercises channel-tile AND hw-tile grid axes.
    check((1, 64, 16, 32), 4, target_block_bytes=8 * 1024)
    # N == 1 with a single natural tile -> megacore channel split.
    check((1, 64, 16, 16), 2)

    print("KERNEL_OK")
</pallas_src>

<mosaic_0001>
module attributes {stable_mosaic.version = 11 : i64} {
  func.func @_shuffle_kernel(%arg0: i32, %arg1: i32, %arg2: i32, %arg3: memref<1x2x2x256xf32, #tpu.memory_space<vmem>>, %arg4: memref<1x2x2x256xf32, #tpu.memory_space<vmem>>) attributes {dimension_semantics = [#tpu.dimension_semantics<parallel>, #tpu.dimension_semantics<parallel>, #tpu.dimension_semantics<parallel>], iteration_bounds = array<i64: 2, 1, 1>, scalar_prefetch = 0 : i64, scratch_operands = 0 : i64, tpu.core_type = #tpu.core_type<tc>, window_params = [{transform_indices = @transform_0, window_bounds = array<i64: 1, 2, 2, 256>}, {transform_indices = @transform_1, window_bounds = array<i64: 1, 2, 2, 256>}]} {
    %c0 = arith.constant 0 : index
    %c0_0 = arith.constant 0 : index
    %c0_1 = arith.constant 0 : index
    %c0_2 = arith.constant 0 : index
    %0 = vector.load %arg3[%c0, %c0_0, %c0_1, %c0_2] : memref<1x2x2x256xf32, #tpu.memory_space<vmem>>, vector<1x1x2x256xf32>
    %1 = vector.shape_cast %0 : vector<1x1x2x256xf32> to vector<2x256xf32>
    %c0_3 = arith.constant 0 : index
    %c0_4 = arith.constant 0 : index
    %c0_5 = arith.constant 0 : index
    %c0_6 = arith.constant 0 : index
    %2 = vector.load %arg4[%c0_3, %c0_4, %c0_5, %c0_6] : memref<1x2x2x256xf32, #tpu.memory_space<vmem>>, vector<1x2x1x256xf32>
    %3 = vector.shape_cast %2 : vector<1x2x1x256xf32> to vector<2x256xf32>
    %4 = vector.shape_cast %1 : vector<2x256xf32> to vector<1x2x1x256xf32>
    tpu.vector_store %arg4[%c0_3, %c0_4, %c0_5, %c0_6], %4 {strides = array<i32>} : memref<1x2x2x256xf32, #tpu.memory_space<vmem>>, vector<1x2x1x256xf32>,
    %c0_7 = arith.constant 0 : index
    %c1 = arith.constant 1 : index
    %c0_8 = arith.constant 0 : index
    %c0_9 = arith.constant 0 : index
    %5 = vector.load %arg3[%c0_7, %c1, %c0_8, %c0_9] : memref<1x2x2x256xf32, #tpu.memory_space<vmem>>, vector<1x1x2x256xf32>
    %6 = vector.shape_cast %5 : vector<1x1x2x256xf32> to vector<2x256xf32>
    %c0_10 = arith.constant 0 : index
    %c0_11 = arith.constant 0 : index
    %c1_12 = arith.constant 1 : index
    %c0_13 = arith.constant 0 : index
    %7 = vector.load %arg4[%c0_10, %c0_11, %c1_12, %c0_13] : memref<1x2x2x256xf32, #tpu.memory_space<vmem>>, vector<1x2x1x256xf32>
    %8 = vector.shape_cast %7 : vector<1x2x1x256xf32> to vector<2x256xf32>
    %9 = vector.shape_cast %6 : vector<2x256xf32> to vector<1x2x1x256xf32>
    tpu.vector_store %arg4[%c0_10, %c0_11, %c1_12, %c0_13], %9 {strides = array<i32>} : memref<1x2x2x256xf32, #tpu.memory_space<vmem>>, vector<1x2x1x256xf32>,
    return
  }
  func.func @transform_0(%arg0: i32, %arg1: i32, %arg2: i32) -> (i32, i32, i32, i32) {
    %c0_i32 = arith.constant 0 : i32
    %c0_i32_0 = arith.constant 0 : i32
    return %arg0, %c0_i32, %arg1, %arg2 : i32, i32, i32, i32
  }
  func.func @transform_1(%arg0: i32, %arg1: i32, %arg2: i32) -> (i32, i32, i32, i32) {
    %c0_i32 = arith.constant 0 : i32
    %c0_i32_0 = arith.constant 0 : i32
    return %arg0, %arg1, %c0_i32, %arg2 : i32, i32, i32, i32
  }
}

</mosaic_0001>

<llo_original>
// kernel: tpu_custom_call.1
$region0: #{tpu_custom_call.1}
  #allocation0 [shape = 'u32[]', space=smem, size = 0x4, offset = 0x4, fixed_abs, tag = 'smem constant byte address 0x4 - core index']
  #allocation1 [shape = 'u32[144,128]{1,0:T(1,128)}', space=vmem, size = 0x12000, scoped, tag = 'internal scratch']
  %s0 = inlined_call_operand.hbm [shape: f32[2,2,2,256], index: 0, kind: input, shape index: {}]
  %s1 = inlined_call_operand.hbm [shape: f32[2,2,2,256], index: 1, kind: output, shape index: {}]
  %s2 = sld [smem:[#allocation0]]
  $region41: #{tpu_custom_call.1} parent=0
    _
  %s4 = ssub.s32 1, %s2
  %s5 = scalar_select 0, %s4, %s2
  $region1: #{tpu_custom_call.1} parent=0
    #allocation2 [shape = 'u8[8192]{0}', space=vmem, size = 0x2000, scoped, tag = 'input window, operand 0']
    #allocation3 [shape = 's32[2]{0}', space=sflag, size = 0x8, scoped, tag = 'scoped memory for tpu_custom_call.1']
    #allocation4 [shape = 's32[2]{0}', space=sflag, size = 0x8, scoped, tag = 'scoped memory for tpu_custom_call.1']
    #allocation5 [shape = 'u8[8192]{0}', space=vmem, size = 0x2000, scoped, tag = 'output window, operand 0']
    %6 = vsyncpa [#allocation3], 0
    %s7 = scalar_lea.sflag [#allocation3], 1
    %8 = vsyncpa %s7, 0
    %9 = vsyncpa [#allocation4], 0
    %s10 = scalar_lea.sflag [#allocation4], 1
    %11 = vsyncpa %s10, 0
    loop: start=0, step=1, limit=4
    $region2: #{tpu_custom_call.1} parent=1 // loop_pre_header
      _
    $region3: #{tpu_custom_call.1} parent=1 // loop_header
      %s13 = sphi 0, %s17
      %p14 = scmp.ge.s32.totalorder %s13, 4
      %s20 = sphi 0, %s39
      %s21 = sphi 0, %s35
      %s22 = sphi 0, %s31
      %s23 = sphi 0, %s20
      %s24 = sphi 0, %s21
      %s25 = sphi 0, %s22
      %s26 = sphi 0, %s23
      %s27 = sphi 0, %s24
      %s28 = sphi 0, %s25
      %s46 = sphi 0, %s48
      %s49 = sphi 0, %s46
      %s50 = sphi 0, %s49
      %s66 = sphi 0, %s50
      %s76 = sphi 0, %s78
      %s79 = sphi 0, %s76
      %s80 = sphi 0, %s79
      %s96 = sphi 0, %s80
    $region4: #{tpu_custom_call.1} parent=1 // loop_header_branch
      %16 = sbr.rel (%p14) target = $region8
    $region5: #{tpu_custom_call.1} parent=1 // loop_body
      %s18 = ssub.s32 %s13, 1
      %s19 = ssub.s32 %s13, 2
      %s29 = sadd.s32 1, %s22
      %p30 = scmp.ge.s32.totalorder %s29, 1
      %s31 = scalar_select %p30, 0, %s29
      %s32 = sadd.s32 1, %s21
      %s33 = scalar_select %p30, %s32, %s21
      %p34 = scmp.ge.s32.totalorder %s33, 1
      %s35 = scalar_select %p34, 0, %s33
      %s36 = sadd.s32 1, %s20
      %s37 = scalar_select %p34, %s36, %s20
      %p38 = scmp.ge.s32.totalorder %s37, 2
      %s39 = scalar_select %p38, 0, %s37
      %s40 = ssub.s32 %s20, %s39
      %s41 = ssub.s32 %s21, %s35
      %s42 = sor.u32 %s40, %s41
      %s43 = ssub.s32 %s22, %s31
      %s44 = sor.u32 %s42, %s43
      %p45 = scmp.eq.s32.totalorder %s44, 0
      %s47 = sadd.s32 %s46, 1
      %s48 = scalar_select %p45, %s46, %s47
      %p51 = pneg %p45
      %p52 = scmp.eq.s32.totalorder %s13, 1
      %p53 = por %p51, %p52
      %p54 = scmp.ne.s32.totalorder %s46, %s49
      %p55 = scmp.eq.s32.totalorder %s13, 0
      %p56 = por %p54, %p55
      %p57 = scmp.ne.s32.totalorder %s46, %s49
      %p58 = scmp.eq.s32.totalorder %s18, 1
      %p59 = por %p57, %p58
      %p60 = scmp.ne.s32.totalorder %s49, %s50
      %p61 = scmp.eq.s32.totalorder %s18, 0
      %p62 = por %p60, %p61
      %p63 = scmp.ne.s32.totalorder %s49, %s50
      %p64 = scmp.eq.s32.totalorder %s19, 1
      %p65 = por %p63, %p64
      %p67 = scmp.ne.s32.totalorder %s50, %s66
      %p68 = scmp.eq.s32.totalorder %s19, 0
      %p69 = por %p67, %p68
      %s70 = ssub.s32 %s20, %s39
      %s71 = ssub.s32 %s21, %s35
      %s72 = sor.u32 %s70, %s71
      %s73 = ssub.s32 %s22, %s31
      %s74 = sor.u32 %s72, %s73
      %p75 = scmp.eq.s32.totalorder %s74, 0
      %s77 = sadd.s32 %s76, 1
      %s78 = scalar_select %p75, %s76, %s77
      %p81 = pneg %p75
      %p82 = scmp.eq.s32.totalorder %s13, 1
      %p83 = por %p81, %p82
      %p84 = scmp.ne.s32.totalorder %s76, %s79
      %p85 = scmp.eq.s32.totalorder %s13, 0
      %p86 = por %p84, %p85
      %p87 = scmp.ne.s32.totalorder %s76, %s79
      %p88 = scmp.eq.s32.totalorder %s18, 1
      %p89 = por %p87, %p88
      %p90 = scmp.ne.s32.totalorder %s79, %s80
      %p91 = scmp.eq.s32.totalorder %s18, 0
      %p92 = por %p90, %p91
      %p93 = scmp.ne.s32.totalorder %s79, %s80
      %p94 = scmp.eq.s32.totalorder %s19, 1
      %p95 = por %p93, %p94
      %p97 = scmp.ne.s32.totalorder %s80, %s96
      %p98 = scmp.eq.s32.totalorder %s19, 0
      %p99 = por %p97, %p98
      %p100 = scmp.le.s32.totalorder 1, %s13
      %p101 = scmp.lt.s32.totalorder %s13, 3
      %p102 = pnand %p100, %p101
      %p103 = pneg %p102
      // Predicated region
      $region9: #{tpu_custom_call.1} parent=5 // pred_check
        _
      $region10: #{tpu_custom_call.1} parent=5 // pred_check_branch
        %105 = sbr.rel (%p102) target = $region12
      $region11: #{tpu_custom_call.1} parent=5 // pred_region
        %s106 = ssub.s32 %s13, 1
      $region12: #{tpu_custom_call.1} parent=5 // pred_fallthru
        _
      %p107 = scmp.lt.s32.totalorder %s13, 2
      // Predicated region
      $region13: #{tpu_custom_call.1} parent=5 // pred_check
        %p108 = pneg %p107
      $region14: #{tpu_custom_call.1} parent=5 // pred_check_branch
        %110 = sbr.rel (%p108) target = $region16
      $region15: #{tpu_custom_call.1} parent=5 // pred_region
        // Predicated region
        $region17: #{tpu_custom_call.1} parent=15 // pred_check
          %p111 = pneg %p56
        $region18: #{tpu_custom_call.1} parent=15 // pred_check_branch
          %113 = sbr.rel (%p111) target = $region20
        $region19: #{tpu_custom_call.1} parent=15 // pred_region
          %s114 = sand.u32 %s46, 1
          %s115 = scalar_lea.sflag [#allocation3], %s114
          %s116 = sand.u32 %s46, 1
          %s117 = smul.addr %s116, 8
          %s118 = scalar_lea.vmem [#allocation2], %s117
          %s119 = smul.u32 2, %s22
          %s121 = ssub.s32 128, 128
          %122 = vsyncadd %s115, %s121
          %s123 = smul.addr %s21, 2
          %s124 = sadd.s32 %s119, %s123
          %s125 = smul.addr %s20, 4
          %s126 = sadd.s32 %s124, %s125
          %s127 = smul.addr %s126, 32
          %s128 = scalar_lea.hbm %s0, %s127
          %s129 = sshll.u32 %s118, 4
          %s130 = int_to_ptr.vmem [resolvable:$true] %s129
          %135 = dma.hbm_to_vmem [thread:$0]  %s128, 128, %s130, %s115, 64, 64, 4
        $region20: #{tpu_custom_call.1} parent=15 // pred_fallthru
          _
      $region16: #{tpu_custom_call.1} parent=5 // pred_fallthru
        _
      %p136 = scmp.le.s32.totalorder 1, %s13
      %p137 = scmp.lt.s32.totalorder %s13, 3
      %p138 = pnand %p136, %p137
      %p139 = pneg %p138
      // Predicated region
      $region21: #{tpu_custom_call.1} parent=5 // pred_check
        _
      $region22: #{tpu_custom_call.1} parent=5 // pred_check_branch
        %141 = sbr.rel (%p138) target = $region24
      $region23: #{tpu_custom_call.1} parent=5 // pred_region
        %s142 = ssub.s32 %s13, 1
        %s143 = sand.u32 %s49, 1
        %s144 = scalar_lea.sflag [#allocation3], %s143
        %s145 = sand.u32 %s49, 1
        %s146 = smul.addr %s145, 8
        %s147 = scalar_lea.vmem [#allocation2], %s146
        // Predicated region
        $region25: #{tpu_custom_call.1} parent=23 // pred_check
          %p148 = pneg %p62
        $region26: #{tpu_custom_call.1} parent=23 // pred_check_branch
          %150 = sbr.rel (%p148) target = $region28
        $region27: #{tpu_custom_call.1} parent=23 // pred_region
          %151 = dma.done %s144, 128
        $region28: #{tpu_custom_call.1} parent=23 // pred_fallthru
          _
        %s152 = sand.u32 %s49, 1
        %s153 = scalar_lea.sflag [#allocation3], %s152
        %s154 = sand.u32 %s49, 1
        %s155 = smul.addr %s154, 8
        %s156 = scalar_lea.vmem [#allocation2], %s155
        %p157 = pneg %p62
        %p158 = pneg %p59
        %p159 = pneg %p92
        %p160 = pneg %p89
        %s161 = sand.u32 %s79, 1
        %s162 = scalar_lea.sflag [#allocation4], %s161
        %s163 = sand.u32 %s79, 1
        %s164 = smul.addr %s163, 8
        %s165 = scalar_lea.vmem [#allocation5], %s164
        %s166 = smul.u32 2, %s25
        %s167 = smul.u32 2, %s24
        %s168 = smul.u32 2, %s25
        %v169 = vld [vmem:[%s147] sm:$0xf]
        %v172 = vunpack.c.l.s4 1966171168
        %v173 = vunpack.c.0.s8 %v172
        %v174 = vlaneseq
        %v175 = vshrl.u32 %v174, 7
        %v176 = vsub.s32 %v173, %v175
        %v177 = vrot.slane %v169, %v176
        %v178 = vcombine.high %v177, %v177
        %v181 = vlaneseq
        %vm182 = vcmp.ge.s32.totalorder %v181, 0
        %vm183 = vcmp.lt.s32.totalorder %v181, 256
        %vm184 = vmand %vm182, %vm183
        %185 = vst.msk [vmem:[%s165] ss:$2 sm:$0x3] %vm184, %v177
        %s186 = scalar_lea.vmem %s165, 4 [#allocation5]
        %187 = vst.msk [vmem:[%s186] ss:$2 sm:$0x3] %vm184, %v178
        %s188 = scalar_lea.vmem %s147, 4 [#allocation2]
        %v189 = vld [vmem:[%s188] sm:$0xf]
        %v192 = vunpack.c.l.s4 1966171168
        %v193 = vunpack.c.0.s8 %v192
        %v194 = vlaneseq
        %v195 = vshrl.u32 %v194, 7
        %v196 = vsub.s32 %v193, %v195
        %v197 = vrot.slane %v189, %v196
        %v198 = vcombine.high %v197, %v197
        %s201 = scalar_lea.vmem %s165, 1 [#allocation5]
        %202 = vst.msk [vmem:[%s201] ss:$2 sm:$0x3] %vm184, %v197
        %s203 = scalar_lea.vmem %s165, 5 [#allocation5]
        %204 = vst.msk [vmem:[%s203] ss:$2 sm:$0x3] %vm184, %v198
        %s205 = sand.u32 %s79, 1
        %s206 = scalar_lea.sflag [#allocation4], %s205
        %s207 = sand.u32 %s79, 1
        %s208 = smul.addr %s207, 8
        %s209 = scalar_lea.vmem [#allocation5], %s208
        // Predicated region
        $region29: #{tpu_custom_call.1} parent=23 // pred_check
          %p210 = pneg %p89
        $region30: #{tpu_custom_call.1} parent=23 // pred_check_branch
          %212 = sbr.rel (%p210) target = $region32
        $region31: #{tpu_custom_call.1} parent=23 // pred_region
          %s213 = smul.u32 2, %s24
          %s214 = smul.u32 2, %s25
          %s216 = ssub.s32 128, 128
          %217 = vsyncadd %s206, %s216
          %s218 = smul.addr %s213, 2
          %s219 = sadd.s32 %s214, %s218
          %s220 = smul.addr %s23, 4
          %s221 = sadd.s32 %s219, %s220
          %s222 = smul.addr %s221, 32
          %s223 = scalar_lea.hbm %s1, %s222
          %s224 = sshll.u32 %s209, 4
          %s225 = int_to_ptr.vmem [resolvable:$true] %s224
          %230 = dma.vmem_to_hbm [thread:$0]  %s225, 128, %s223, %s206, 64, 64, 4
        $region32: #{tpu_custom_call.1} parent=23 // pred_fallthru
          _
      $region24: #{tpu_custom_call.1} parent=5 // pred_fallthru
        _
      %p231 = scmp.le.s32.totalorder 2, %s13
      // Predicated region
      $region33: #{tpu_custom_call.1} parent=5 // pred_check
        %p232 = pneg %p231
      $region34: #{tpu_custom_call.1} parent=5 // pred_check_branch
        %234 = sbr.rel (%p232) target = $region36
      $region35: #{tpu_custom_call.1} parent=5 // pred_region
        %s235 = ssub.s32 %s13, 2
        // Predicated region
        $region37: #{tpu_custom_call.1} parent=35 // pred_check
          %p236 = pneg %p95
        $region38: #{tpu_custom_call.1} parent=35 // pred_check_branch
          %238 = sbr.rel (%p236) target = $region40
        $region39: #{tpu_custom_call.1} parent=35 // pred_region
          %s239 = sand.u32 %s80, 1
          %s240 = scalar_lea.sflag [#allocation4], %s239
          %s241 = sand.u32 %s80, 1
          %s242 = smul.addr %s241, 8
          %s243 = scalar_lea.vmem [#allocation5], %s242
          %244 = dma.done %s240, 128
        $region40: #{tpu_custom_call.1} parent=35 // pred_fallthru
          _
      $region36: #{tpu_custom_call.1} parent=5 // pred_fallthru
        _
    $region6: #{tpu_custom_call.1} parent=1 // loop_footer
      %s17 = sadd.s32 1, %s13
    $region7: #{tpu_custom_call.1} parent=1 // loop_footer_branch
      %12 = sbr.rel target = $region3
    $region8: #{tpu_custom_call.1} parent=1 // loop_exit
      _
    %245 = vsyncpa [#allocation3], 1
    %s246 = scalar_lea.sflag [#allocation3], 1
    %247 = vsyncpa %s246, 1
    %248 = vsyncpa [#allocation4], 1
    %s249 = scalar_lea.sflag [#allocation4], 1
    %250 = vsyncpa %s249, 1

</llo_original>
